<compile_context>
chip_gen: v7x
topology: tpu7x:2x2x1
jax: 0.10.0
libtpu: 0.0.40
codegen_flags: <defaults>
</compile_context>

<pallas_src>
from typing import Dict, List, Tuple

import jax
import jax.numpy as jnp
from jax.experimental import pallas as pl
from jax.experimental.pallas import tpu as pltpu


# ----------------------------------------------------------------------------
# Helpers
# ----------------------------------------------------------------------------
def _round_up(x: int, m: int) -> int:
    return ((x + m - 1) // m) * m


def _prod(shape) -> int:
    p = 1
    for s in shape:
        p *= int(s)
    return p


def _vmem_capacity_bytes() -> int:
    """Per-core VMEM capacity; conservative (v7x = 64 MiB) if query fails."""
    try:
        info = pltpu.get_tpu_info()
        cap = getattr(info, "vmem_capacity_bytes", None)
        if cap:
            return int(cap)
    except Exception:
        pass
    return 64 * 1024 * 1024


def _budgets() -> Tuple[int, int, int]:
    """(double-buffered footprint cap, vmem_limit_bytes, tile_b cap)."""
    cap = _vmem_capacity_bytes()
    footprint_cap = (cap * 3) // 8      # 24 MiB on v7x (64), 48 MiB on v5e/v6e (128)
    vmem_limit = (cap * 9) // 16        # 36 MiB on v7x,     72 MiB on v5e/v6e
    tile_b_cap = 512 if cap <= 96 * 1024 * 1024 else 1024
    return footprint_cap, vmem_limit, tile_b_cap


def _sublane(itemsize: int) -> int:
    return 8 if itemsize >= 4 else (16 if itemsize == 2 else 32)


def _choose_tiles(batch: int, k_dim: int, d_out_pad: int, in_isz: int,
                  out_isz: int, sublane: int, footprint_cap: int,
                  tile_b_cap: int) -> Tuple[int, int]:
    """Pick (tile_b, tile_n): lane-dense (tile_n % 128 == 0, divides d_out_pad),
    tile_b sublane-aligned, double-buffered footprint within the VMEM budget."""

    def tile_n_for(cap_cols: int) -> int:
        units = d_out_pad // 128
        k_max = max(1, min(cap_cols // 128, units))
        for k in range(k_max, 0, -1):
            if units % k == 0:
                return k * 128
        return 128

    def footprint(tb: int, tn: int) -> int:
        # 2x (double-buffered) x-tile + W-tile + bias-tile + out-tile
        return 2 * ((tb * k_dim + k_dim * tn + tn) * in_isz + tb * tn * out_isz)

    tile_n = tile_n_for(1024)
    tile_b = min(tile_b_cap, _round_up(max(batch, 1), sublane))
    while tile_n > 128 and footprint(tile_b, tile_n) > footprint_cap:
        tile_n = tile_n_for(tile_n // 2)
    while tile_b > sublane and footprint(tile_b, tile_n) > footprint_cap:
        tile_b = max(sublane, _round_up(tile_b // 2, sublane))
    # TODO(synk): add a K (reduction) grid axis with a VMEM accumulator if
    # k_dim * 128 * itemsize alone ever exceeds the budget (not needed for the
    # head/embedding sizes this decoder is used with).
    return tile_b, tile_n


# ----------------------------------------------------------------------------
# Shared kernel body:  y = x_tile @ w_tile + b_tile   (f32 MXU accumulation)
# ----------------------------------------------------------------------------
def _linear_bias_kernel(x_ref, w_ref, b_ref, o_ref):
    acc = jnp.dot(x_ref[...], w_ref[...], preferred_element_type=jnp.float32)
    o_ref[...] = (acc + b_ref[...].astype(jnp.float32)).astype(o_ref.dtype)


# ----------------------------------------------------------------------------
# Path A: block-diagonal single matmul (small heads, the common case here)
# ----------------------------------------------------------------------------
def _blockdiag_decoder(x_flat: jnp.ndarray, w_bd: jnp.ndarray, b_bd: jnp.ndarray,
                       *, tile_b: int, tile_n: int, out_dtype,
                       vmem_limit: int) -> jnp.ndarray:
    """x_flat: [B_pad, K], w_bd: [K, D_out_pad], b_bd: [1, D_out_pad]."""
    b_pad, k_dim = x_flat.shape
    d_out_pad = w_bd.shape[-1]
    b_tiles, n_tiles = b_pad // tile_b, d_out_pad // tile_n

    isz_x = jnp.dtype(x_flat.dtype).itemsize
    isz_w = jnp.dtype(w_bd.dtype).itemsize
    isz_o = jnp.dtype(out_dtype).itemsize
    # grid = (batch, n): x tile is stationary across the inner n axis (read once);
    # the (small) W_bd is re-read once per batch tile.
    cost = pl.CostEstimate(
        flops=2 * b_pad * k_dim * d_out_pad,
        transcendentals=0,
        bytes_accessed=int(x_flat.size * isz_x
                           + b_tiles * (w_bd.size + b_bd.size) * isz_w
                           + b_pad * d_out_pad * isz_o),
    )
    return pl.pallas_call(
        _linear_bias_kernel,
        out_shape=jax.ShapeDtypeStruct((b_pad, d_out_pad), out_dtype),
        grid=(b_tiles, n_tiles),
        in_specs=[
            pl.BlockSpec((tile_b, k_dim), lambda b, n: (b, 0)),
            pl.BlockSpec((k_dim, tile_n), lambda b, n: (0, n)),
            pl.BlockSpec((1, tile_n), lambda b, n: (0, n)),
        ],
        out_specs=pl.BlockSpec((tile_b, tile_n), lambda b, n: (b, n)),
        compiler_params=pltpu.CompilerParams(
            dimension_semantics=("parallel", "parallel"),
            vmem_limit_bytes=int(vmem_limit)),
        cost_estimate=cost,
    )(x_flat, w_bd, b_bd)


# ----------------------------------------------------------------------------
# Path B: per-object layout with an N (d_out) grid axis (large heads)
# ----------------------------------------------------------------------------
def _per_object_decoder(x_objs: jnp.ndarray, w_all: jnp.ndarray,
                        b_all: jnp.ndarray, *, tile_b: int, tile_n: int,
                        out_dtype, vmem_limit: int) -> jnp.ndarray:
    """x_objs: [n_obj, B_pad, D_in], w_all: [n_obj, D_in, D_out_pad],
    b_all: [n_obj, 1, D_out_pad]  ->  [n_obj, B_pad, D_out_pad]."""
    n_obj, b_pad, d_in = x_objs.shape
    d_out_pad = w_all.shape[-1]
    b_tiles, n_tiles = b_pad // tile_b, d_out_pad // tile_n

    isz_x = jnp.dtype(x_objs.dtype).itemsize
    isz_w = jnp.dtype(w_all.dtype).itemsize
    isz_o = jnp.dtype(out_dtype).itemsize
    # Weight-stationary: batch is the innermost axis, so the W/bias tiles (index
    # depends only on (obj, n)) are not re-DMA'd per batch tile; x is re-read
    # once per N tile.
    cost = pl.CostEstimate(
        flops=2 * n_obj * b_pad * d_in * d_out_pad,
        transcendentals=0,
        bytes_accessed=int(n_tiles * x_objs.size * isz_x
                           + (w_all.size + b_all.size) * isz_w
                           + n_obj * b_pad * d_out_pad * isz_o),
    )

    obj_outer = n_obj >= n_tiles   # pick the larger axis outermost (v7x 2-TC balance)
    if obj_outer:
        grid = (n_obj, n_tiles, b_tiles)
        x_map = lambda o, n, b: (o, b, 0)
        w_map = lambda o, n, b: (o, 0, n)
        s_map = lambda o, n, b: (o, 0, n)
        o_map = lambda o, n, b: (o, b, n)
    else:
        grid = (n_tiles, n_obj, b_tiles)
        x_map = lambda n, o, b: (o, b, 0)
        w_map = lambda n, o, b: (o, 0, n)
        s_map = lambda n, o, b: (o, 0, n)
        o_map = lambda n, o, b: (o, b, n)

    return pl.pallas_call(
        _linear_bias_kernel,
        out_shape=jax.ShapeDtypeStruct((n_obj, b_pad, d_out_pad), out_dtype),
        grid=grid,
        in_specs=[
            pl.BlockSpec((None, tile_b, d_in), x_map),     # object axis squeezed
            pl.BlockSpec((None, d_in, tile_n), w_map),
            pl.BlockSpec((None, 1, tile_n), s_map),
        ],
        out_specs=pl.BlockSpec((None, tile_b, tile_n), o_map),
        compiler_params=pltpu.CompilerParams(
            dimension_semantics=("parallel", "parallel", "parallel"),
            vmem_limit_bytes=int(vmem_limit)),
        cost_estimate=cost,
    )(x_objs, w_all, b_all)


# ----------------------------------------------------------------------------
# Synthetic Taskinfo (shapes only — what __init__ needs)
# ----------------------------------------------------------------------------
class SyntheticTaskinfo:
    """Each object has a list of (var_name, attr_dim) state variables.
    Every variable uses a Normal ptype -> param_sizes = {'mean': d, 'scale': d}."""

    def __init__(self, objs: List[List[Tuple[str, int]]]):
        self._objs = objs
        self.n_allobj = len(objs)

    def variables_of_obj(self, i_obj: int) -> List[Tuple[str, int]]:
        return self._objs[i_obj]

    @staticmethod
    def param_sizes(attr_dim: int) -> Dict[str, int]:
        return {"mean": attr_dim, "scale": attr_dim}


# ----------------------------------------------------------------------------
# ObjectDecoder in JAX (parameters + forward through the fused Pallas kernels)
# ----------------------------------------------------------------------------
class ObjectDecoderPallas:
    def __init__(self, taskinfo: SyntheticTaskinfo, dim_in: int,
                 dtype=jnp.float32, out_dtype=None, seed: int = 0,
                 packing: str = "auto"):
        self.info = taskinfo
        self.dim_in = dim_in
        self.dtype = dtype
        self.out_dtype = dtype if out_dtype is None else out_dtype

        key = jax.random.PRNGKey(seed)
        # params[(i_obj, var_name, param_key)] = (W [D_out, D_in], b [D_out])
        self.params: Dict[Tuple[int, str, str], Tuple[jnp.ndarray, jnp.ndarray]] = {}
        bound = 1.0 / float(dim_in) ** 0.5
        for i_obj in range(taskinfo.n_allobj):
            for var_name, attr_dim in taskinfo.variables_of_obj(i_obj):
                for pkey, psize in taskinfo.param_sizes(attr_dim).items():
                    key, kw, kb = jax.random.split(key, 3)
                    w = jax.random.uniform(kw, (psize, dim_in), jnp.float32,
                                           -bound, bound).astype(dtype)
                    b = jax.random.uniform(kb, (psize,), jnp.float32,
                                           -bound, bound).astype(dtype)
                    self.params[(i_obj, var_name, pkey)] = (w, b)

        # Per-object concatenation of every (var, param) head along D_out.
        n_obj = taskinfo.n_allobj
        per_obj_w, per_obj_b, per_obj_slices, per_obj_tot = [], [], [], []
        for i_obj in range(n_obj):
            ws, bs, slices_i, off = [], [], [], 0
            for var_name, attr_dim in taskinfo.variables_of_obj(i_obj):
                for pkey, psize in taskinfo.param_sizes(attr_dim).items():
                    w, b = self.params[(i_obj, var_name, pkey)]
                    ws.append(w)
                    bs.append(b)
                    slices_i.append((var_name, pkey, off, off + psize))
                    off += psize
            per_obj_w.append(jnp.concatenate(ws, axis=0).T)     # [D_in, tot_i]
            per_obj_b.append(jnp.concatenate(bs, axis=0))       # [tot_i]
            per_obj_slices.append(slices_i)
            per_obj_tot.append(off)
        self._per_obj_slices = per_obj_slices

        d_out_total = sum(per_obj_tot)
        itemsize = jnp.dtype(dtype).itemsize
        bd_bytes = n_obj * dim_in * _round_up(max(d_out_total, 1), 128) * itemsize
        if packing == "auto":
            packing = "block_diag" if bd_bytes <= (8 << 20) else "per_object"
        self.packing = packing

        if packing == "block_diag":
            # One matmul for everything: X[B, n_obj*D_in] @ W_bd. Single 128-pad
            # over the TOTAL output width (no per-object pad amplification).
            self.d_out_pad = _round_up(max(d_out_total, 1), 128)
            w_bd = jnp.zeros((n_obj * dim_in, self.d_out_pad), dtype)
            b_bd = jnp.zeros((self.d_out_pad,), dtype)
            self._head_cols: Dict[Tuple[int, str, str], Tuple[int, int]] = {}
            col = 0
            for i_obj in range(n_obj):
                tot_i = per_obj_tot[i_obj]
                w_bd = w_bd.at[i_obj * dim_in:(i_obj + 1) * dim_in,
                               col:col + tot_i].set(per_obj_w[i_obj])
                b_bd = b_bd.at[col:col + tot_i].set(per_obj_b[i_obj])
                for var_name, pkey, lo, hi in per_obj_slices[i_obj]:
                    self._head_cols[(i_obj, var_name, pkey)] = (col + lo, col + hi)
                col += tot_i
            self.w_bd = w_bd                                   # [n_obj*D_in, D_out_pad]
            self.b_bd = b_bd[None, :]                          # [1, D_out_pad]
        else:
            # Per-object layout: pad every object to a common, lane-aligned
            # D_out_pad and stack.
            self.d_out_pad = _round_up(max(per_obj_tot), 128)
            w_stack, b_stack = [], []
            for w_cat, b_cat, tot in zip(per_obj_w, per_obj_b, per_obj_tot):
                pad = self.d_out_pad - tot
                w_stack.append(jnp.pad(w_cat, ((0, 0), (0, pad))))
                b_stack.append(jnp.pad(b_cat, ((0, pad),)))
            self.w_all = jnp.stack(w_stack, axis=0)            # [n_obj, D_in, D_out_pad]
            self.b_all = jnp.stack(b_stack, axis=0)[:, None, :]  # [n_obj, 1, D_out_pad]

    def __call__(self, x: jnp.ndarray):
        # x: [..., n_obj, dim_in]
        lead = x.shape[:-2]
        n_obj = self.info.n_allobj
        batch = _prod(lead) if lead else 1

        footprint_cap, vmem_limit, tile_b_cap = _budgets()
        in_isz = jnp.dtype(self.dtype).itemsize
        out_isz = jnp.dtype(self.out_dtype).itemsize
        sub = _sublane(min(in_isz, out_isz))

        if self.packing == "block_diag":
            k_dim = n_obj * self.dim_in
            # contiguous reshape — no wrapper-side transpose / extra HBM pass
            x_flat = x.reshape(batch, k_dim).astype(self.dtype)
            tile_b, tile_n = _choose_tiles(batch, k_dim, self.d_out_pad, in_isz,
                                           out_isz, sub, footprint_cap, tile_b_cap)
            b_pad = _round_up(batch, tile_b)
            if b_pad != batch:
                x_flat = jnp.pad(x_flat, ((0, b_pad - batch), (0, 0)))
            y = _blockdiag_decoder(x_flat, self.w_bd, self.b_bd,
                                   tile_b=tile_b, tile_n=tile_n,
                                   out_dtype=self.out_dtype, vmem_limit=vmem_limit)
            out: Dict[Tuple[int, str], Dict[str, jnp.ndarray]] = {}
            for i_obj in range(n_obj):
                for var_name, pkey, _, _ in self._per_obj_slices[i_obj]:
                    lo, hi = self._head_cols[(i_obj, var_name, pkey)]
                    out.setdefault((i_obj, var_name), {})[pkey] = (
                        y[:batch, lo:hi].reshape(*lead, hi - lo))
            return out

        # per-object path (large heads)
        x2 = x.reshape(batch, n_obj, self.dim_in).astype(self.dtype)
        # NOTE: materialized transpose kept for the large-head path only (its
        # cost is small relative to weight traffic there); the small-head path
        # above needs no transpose at all.
        x2 = jnp.moveaxis(x2, 1, 0)                              # [n_obj, B, D_in]
        tile_b, tile_n = _choose_tiles(batch, self.dim_in, self.d_out_pad, in_isz,
                                       out_isz, sub, footprint_cap, tile_b_cap)
        b_pad = _round_up(batch, tile_b)
        if b_pad != batch:
            x2 = jnp.pad(x2, ((0, 0), (0, b_pad - batch), (0, 0)))
        y = _per_object_decoder(x2, self.w_all, self.b_all,
                                tile_b=tile_b, tile_n=tile_n,
                                out_dtype=self.out_dtype, vmem_limit=vmem_limit)
        out = {}
        for i_obj in range(n_obj):
            for var_name, pkey, lo, hi in self._per_obj_slices[i_obj]:
                out.setdefault((i_obj, var_name), {})[pkey] = (
                    y[i_obj, :batch, lo:hi].reshape(*lead, hi - lo))
        return out


# ----------------------------------------------------------------------------
# Pure-JAX reference for correctness checks
# ----------------------------------------------------------------------------
def reference_forward(model: ObjectDecoderPallas, x: jnp.ndarray):
    out = {}
    x_m = x.astype(model.dtype).astype(jnp.float32)
    for i_obj in range(model.info.n_allobj):
        x_obj = x_m[..., i_obj, :]
        for var_name, attr_dim in model.info.variables_of_obj(i_obj):
            d = {}
            for pkey in model.info.param_sizes(attr_dim):
                w, b = model.params[(i_obj, var_name, pkey)]
                d[pkey] = x_obj @ w.astype(jnp.float32).T + b.astype(jnp.float32)
            out[(i_obj, var_name)] = d
    return out


def _block(out):
    for params in out.values():
        for v in params.values():
            jax.block_until_ready(v)


def _check(out, ref, atol, rtol):
    for var_id in ref:
        for pkey in ref[var_id]:
            a = out[var_id][pkey].astype(jnp.float32)
            b = ref[var_id][pkey]
            assert a.shape == b.shape, (var_id, pkey, a.shape, b.shape)
            assert jnp.allclose(a, b, atol=atol, rtol=rtol), (var_id, pkey)


if __name__ == "__main__":
    # Small shapes consistent with the forward: x [batch, n_obj, dim_in]
    batch, dim_in = 8, 32
    taskinfo = SyntheticTaskinfo(
        objs=[
            [("position", 4), ("velocity", 2)],   # object 0: two state vars
            [("angle", 3)],                       # object 1: one state var
        ]
    )

    key = jax.random.PRNGKey(0)
    x = jax.random.normal(key, (batch, taskinfo.n_allobj, dim_in), jnp.float32)

    # --- f32, auto packing (small heads -> single block-diagonal matmul) ----
    model_f32 = ObjectDecoderPallas(taskinfo, dim_in, dtype=jnp.float32, seed=0)
    out_f32 = model_f32(x)
    _block(out_f32)
    _check(out_f32, reference_forward(model_f32, x), atol=1e-4, rtol=1e-4)

    # --- forced per-object (large-head) path, same data ----------------------
    model_po = ObjectDecoderPallas(taskinfo, dim_in, dtype=jnp.float32, seed=0,
                                   packing="per_object")
    out_po = model_po(x)
    _block(out_po)
    _check(out_po, reference_forward(model_po, x), atol=1e-4, rtol=1e-4)

    # --- bf16 compute with f32 output (no lossy bf16 round trip) ------------
    model_bf16 = ObjectDecoderPallas(taskinfo, dim_in, dtype=jnp.bfloat16,
                                     out_dtype=jnp.float32, seed=0)
    out_bf16 = model_bf16(x)
    _block(out_bf16)
    _check(out_bf16, reference_forward(model_bf16, x), atol=5e-2, rtol=5e-2)

    print("KERNEL_OK")
</pallas_src>

<mosaic_0001>
module attributes {stable_mosaic.version = 11 : i64} {
  func.func @_linear_bias_kernel(%arg0: i32, %arg1: i32, %arg2: memref<8x64xf32, #tpu.memory_space<vmem>>, %arg3: memref<64x128xf32, #tpu.memory_space<vmem>>, %arg4: memref<1x128xf32, #tpu.memory_space<vmem>>, %arg5: memref<8x128xf32, #tpu.memory_space<vmem>>) attributes {dimension_semantics = [#tpu.dimension_semantics<parallel>, #tpu.dimension_semantics<parallel>], iteration_bounds = array<i64: 1, 1>, scalar_prefetch = 0 : i64, scratch_operands = 0 : i64, tpu.core_type = #tpu.core_type<tc>, window_params = [{transform_indices = @transform_0, window_bounds = array<i64: 8, 64>}, {transform_indices = @transform_1, window_bounds = array<i64: 64, 128>}, {transform_indices = @transform_2, window_bounds = array<i64: 1, 128>}, {transform_indices = @transform_3, window_bounds = array<i64: 8, 128>}]} {
    %c0 = arith.constant 0 : index
    %c0_0 = arith.constant 0 : index
    %0 = vector.load %arg2[%c0, %c0_0] : memref<8x64xf32, #tpu.memory_space<vmem>>, vector<8x64xf32>
    %c0_1 = arith.constant 0 : index
    %c0_2 = arith.constant 0 : index
    %1 = vector.load %arg3[%c0_1, %c0_2] : memref<64x128xf32, #tpu.memory_space<vmem>>, vector<64x128xf32>
    %cst = arith.constant dense<0.000000e+00> : vector<8x128xf32>
    %2 = tpu.matmul %0, %1, %cst {dimension_numbers = #tpu.dot_dimension_numbers<[1], [0], [0], [1], [0, 0, 1, 1], [], []>} : vector<8x64xf32>, vector<64x128xf32>, vector<8x128xf32> -> vector<8x128xf32>
    %c0_3 = arith.constant 0 : index
    %c0_4 = arith.constant 0 : index
    %3 = vector.load %arg4[%c0_3, %c0_4] : memref<1x128xf32, #tpu.memory_space<vmem>>, vector<1x128xf32>
    %4 = vector.broadcast %3 : vector<1x128xf32> to vector<8x128xf32>
    %5 = arith.addf %2, %4 : vector<8x128xf32>
    %c0_5 = arith.constant 0 : index
    %c0_6 = arith.constant 0 : index
    %6 = vector.load %arg5[%c0_5, %c0_6] : memref<8x128xf32, #tpu.memory_space<vmem>>, vector<8x128xf32>
    tpu.vector_store %arg5[%c0_5, %c0_6], %5 {strides = array<i32>} : memref<8x128xf32, #tpu.memory_space<vmem>>, vector<8x128xf32>,
    return
  }
  func.func @transform_0(%arg0: i32, %arg1: i32) -> (i32, i32) {
    %c0_i32 = arith.constant 0 : i32
    %c0_i32_0 = arith.constant 0 : i32
    return %arg0, %c0_i32 : i32, i32
  }
  func.func @transform_1(%arg0: i32, %arg1: i32) -> (i32, i32) {
    %c0_i32 = arith.constant 0 : i32
    %c0_i32_0 = arith.constant 0 : i32
    return %c0_i32, %arg1 : i32, i32
  }
  func.func @transform_2(%arg0: i32, %arg1: i32) -> (i32, i32) {
    %c0_i32 = arith.constant 0 : i32
    %c0_i32_0 = arith.constant 0 : i32
    return %c0_i32, %arg1 : i32, i32
  }
  func.func @transform_3(%arg0: i32, %arg1: i32) -> (i32, i32) {
    %c0_i32 = arith.constant 0 : i32
    return %arg0, %arg1 : i32, i32
  }
}

</mosaic_0001>

<llo_original>
// kernel: tpu_custom_call.1
$region0: #{tpu_custom_call.1}
  #allocation0 [shape = 'u32[]', space=smem, size = 0x4, offset = 0x4, fixed_abs, tag = 'smem constant byte address 0x4 - core index']
  #allocation1 [shape = 'u32[144,128]{1,0:T(1,128)}', space=vmem, size = 0x12000, scoped, tag = 'internal scratch']
  %s0 = inlined_call_operand.hbm [shape: f32[8,64], index: 0, kind: input, shape index: {}]
  %s1 = inlined_call_operand.hbm [shape: f32[64,128], index: 1, kind: input, shape index: {}]
  %s2 = inlined_call_operand.vmem [shape: f32[1,128], index: 2, kind: input, shape index: {}]
  %s3 = inlined_call_operand.hbm [shape: f32[8,128], index: 3, kind: output, shape index: {}]
  %s4 = sld [smem:[#allocation0]]
  $region30: #{tpu_custom_call.1} parent=0
    _
  %s6 = ssub.s32 1, %s4
  %s7 = scalar_select 0, %s6, %s4
  $region1: #{tpu_custom_call.1} parent=0
    #allocation2 [shape = 'u8[4096]{0}', space=vmem, size = 0x1000, scoped, tag = 'input window, operand 0, single buffered']
    #allocation3 [shape = 's32[1]{0}', space=sflag, size = 0x4, scoped, tag = 'scoped memory for tpu_custom_call.1']
    #allocation4 [shape = 's32[1]{0}', space=sflag, size = 0x4, scoped, tag = 'scoped memory for tpu_custom_call.1']
    #allocation5 [shape = 'u8[32768]{0}', space=vmem, size = 0x8000, scoped, tag = 'input window, operand 1, single buffered']
    #allocation6 [shape = 's32[1]{0}', space=sflag, size = 0x4, scoped, tag = 'scoped memory for tpu_custom_call.1']
    #allocation7 [shape = 'u8[4096]{0}', space=vmem, size = 0x1000, scoped, tag = 'output window, operand 0, single buffered']
    %8 = vsyncpa [#allocation3], 0
    %9 = vsyncpa [#allocation6], 0
    %10 = vsyncpa [#allocation4], 0
    // Predicated region
    $region2: #{tpu_custom_call.1} parent=1 // pred_check
      _
    $region3: #{tpu_custom_call.1} parent=1 // pred_check_branch
      %12 = sbr.rel (0) target = $region5
    $region4: #{tpu_custom_call.1} parent=1 // pred_region
      %s14 = ssub.s32 128, 128
      %15 = vsyncadd [#allocation3], %s14
      %s17 = sshll.u32 [#allocation2], 4
      %s18 = int_to_ptr.vmem [resolvable:$true] %s17
      %20 = dma.hbm_to_vmem [thread:$0]  %s0, 128, %s18, [#allocation3]
    $region5: #{tpu_custom_call.1} parent=1 // pred_fallthru
      _
    // Predicated region
    $region6: #{tpu_custom_call.1} parent=1 // pred_check
      _
    $region7: #{tpu_custom_call.1} parent=1 // pred_check_branch
      %22 = sbr.rel (0) target = $region9
    $region8: #{tpu_custom_call.1} parent=1 // pred_region
      %s24 = ssub.s32 1024, 1024
      %25 = vsyncadd [#allocation6], %s24
      %s26 = sshll.u32 [#allocation5], 4
      %s27 = int_to_ptr.vmem [resolvable:$true] %s26
      %32 = dma.hbm_to_vmem [thread:$0]  %s1, 1024, %s27, [#allocation6], 128, 128, 8
    $region9: #{tpu_custom_call.1} parent=1 // pred_fallthru
      _
    // Predicated region
    $region10: #{tpu_custom_call.1} parent=1 // pred_check
      _
    $region11: #{tpu_custom_call.1} parent=1 // pred_check_branch
      %34 = sbr.rel (0) target = $region13
    $region12: #{tpu_custom_call.1} parent=1 // pred_region
      _
    $region13: #{tpu_custom_call.1} parent=1 // pred_fallthru
      _
    // Predicated region
    $region14: #{tpu_custom_call.1} parent=1 // pred_check
      _
    $region15: #{tpu_custom_call.1} parent=1 // pred_check_branch
      %36 = sbr.rel (0) target = $region17
    $region16: #{tpu_custom_call.1} parent=1 // pred_region
      %37 = dma.done [#allocation3], 128
    $region17: #{tpu_custom_call.1} parent=1 // pred_fallthru
      _
    // Predicated region
    $region18: #{tpu_custom_call.1} parent=1 // pred_check
      _
    $region19: #{tpu_custom_call.1} parent=1 // pred_check_branch
      %39 = sbr.rel (0) target = $region21
    $region20: #{tpu_custom_call.1} parent=1 // pred_region
      %40 = dma.done [#allocation6], 1024
    $region21: #{tpu_custom_call.1} parent=1 // pred_fallthru
      _
    %v41 = vld [vmem:[#allocation2] sm:$0xff]
    %v42 = vld [vmem:[#allocation5] sm:$0xff]
    %v43 = vld [vmem:[#allocation5 + $0x8] sm:$0xff]
    %v44 = vld [vmem:[#allocation5 + $0x10] sm:$0xff]
    %v45 = vld [vmem:[#allocation5 + $0x18] sm:$0xff]
    %v46 = vld [vmem:[#allocation5 + $0x20] sm:$0xff]
    %v47 = vld [vmem:[#allocation5 + $0x28] sm:$0xff]
    %v48 = vld [vmem:[#allocation5 + $0x30] sm:$0xff]
    %v49 = vld [vmem:[#allocation5 + $0x38] sm:$0xff]
    %v50 = vld [vmem:[%s2] sm:$0x1]
    %v52 = vlaneseq
    %v53 = vshrl.u32 %v52, 7
    %v54 = vsub.s32 0, %v53
    %v55 = vrot.slane %v50, %v54
    %vm57 = vcmask 523264
    %v59 = vsel %vm57, %v41, 0
    %61 = vmatprep.subr.mxu0 0.0
    %62 = vmatpush1.msra.mxu0 %v42
    %63 = vmatprep.subr.mxu0 0.0
    %64 = vmatpush1.msra.mxu0 %v43
    %65 = vmatprep.subr.mxu0 0.0
    %66 = vmatpush1.msra.mxu0 %v44
    %67 = vmatprep.subr.mxu0 0.0
    %68 = vmatpush1.msra.mxu0 %v45
    %69 = vmatprep.subr.mxu0 0.0
    %70 = vmatpush1.msra.mxu0 %v46
    %71 = vmatprep.subr.mxu0 0.0
    %72 = vmatpush1.msra.mxu0 %v47
    %73 = vmatprep.subr.mxu0 0.0
    %74 = vmatpush1.msra.mxu0 %v48
    %75 = vmatprep.subr.mxu0 0.0
    %76 = vmatpush1.msra.mxu0 %v49
    %77 = vmatprep.subr.mxu0 0.0
    %78 = vmatpush1.msra.mxu0 0.0
    %79 = vmatprep.subr.mxu0 0.0
    %80 = vmatpush1.msra.mxu0 0.0
    %81 = vmatprep.subr.mxu0 0.0
    %82 = vmatpush1.msra.mxu0 0.0
    %83 = vmatprep.subr.mxu0 0.0
    %84 = vmatpush1.msra.mxu0 0.0
    %85 = vmatprep.subr.mxu0 0.0
    %86 = vmatpush1.msra.mxu0 0.0
    %87 = vmatprep.subr.mxu0 0.0
    %88 = vmatpush1.msra.mxu0 0.0
    %89 = vmatprep.subr.mxu0 0.0
    %90 = vmatpush1.msra.mxu0 0.0
    %91 = vmatprep.subr.mxu0 0.0
    %92 = vmatpush1.msra.mxu0 0.0
    %93 = vmatprep.subr.mxu0 0.0
    %94 = vmatpush1.msra.mxu0 0.0
    %95 = vmatprep.subr.mxu0 0.0
    %96 = vmatpush1.msra.mxu0 0.0
    %97 = vmatprep.subr.mxu0 0.0
    %98 = vmatpush1.msra.mxu0 0.0
    %99 = vmatprep.subr.mxu0 0.0
    %100 = vmatpush1.msra.mxu0 0.0
    %101 = vmatprep.subr.mxu0 0.0
    %102 = vmatpush1.msra.mxu0 0.0
    %103 = vmatprep.subr.mxu0 0.0
    %104 = vmatpush1.msra.mxu0 0.0
    %105 = vmatprep.subr.mxu0 0.0
    %106 = vmatpush1.msra.mxu0 0.0
    %107 = vmatprep.subr.mxu0 0.0
    %108 = vmatpush1.msra.mxu0 0.0
    %109 = vmatprep.subr.mxu0 0.0
    %110 = vmatpush1.msra.mxu0 0.0
    %111 = vmatprep.subr.mxu0 0.0
    %112 = vmatpush1.msra.mxu0 0.0
    %113 = vmatprep.subr.mxu0 0.0
    %114 = vmatpush1.msra.mxu0 0.0
    %115 = vmatprep.subr.mxu0 0.0
    %116 = vmatpush1.msra.mxu0 0.0
    %117 = vmatprep.subr.mxu0 0.0
    %118 = vmatpush1.msra.mxu0 0.0
    %119 = vmatprep.subr.mxu0 0.0
    %120 = vmatpush1.msra.mxu0 0.0
    %121 = vmatprep.subr.mxu0 0.0
    %122 = vmatpush1.msra.mxu0 0.0
    %123 = vmatprep.subr.mxu0 0.0
    %124 = vmatpush1.msra.mxu0 0.0
    %125 = vmatprep.mubr.f32.mxu0 0.0
    %126 = vmatmul.mubr.f32.gmra.mrb[0].mxu0 %v59
    %v127 = vpop.f32.mrb[0].mxu0
    %v128 = vadd.f32 %v55, %v127
    %v129 = vpop.f32.mrb[0].mxu0
    %130 = vdwg.mxu0
    %131 = vst [vmem:[#allocation7] sm:$0xff] %v128
    // Predicated region
    $region22: #{tpu_custom_call.1} parent=1 // pred_check
      _
    $region23: #{tpu_custom_call.1} parent=1 // pred_check_branch
      %133 = sbr.rel (0) target = $region25
    $region24: #{tpu_custom_call.1} parent=1 // pred_region
      %s135 = ssub.s32 128, 128
      %136 = vsyncadd [#allocation4], %s135
      %s138 = sshll.u32 [#allocation7], 4
      %s139 = int_to_ptr.vmem [resolvable:$true] %s138
      %141 = dma.vmem_to_hbm [thread:$0]  %s139, 128, %s3, [#allocation4]
    $region25: #{tpu_custom_call.1} parent=1 // pred_fallthru
      _
    // Predicated region
    $region26: #{tpu_custom_call.1} parent=1 // pred_check
      _
    $region27: #{tpu_custom_call.1} parent=1 // pred_check_branch
      %143 = sbr.rel (0) target = $region29
    $region28: #{tpu_custom_call.1} parent=1 // pred_region
      %144 = dma.done [#allocation4], 128
    $region29: #{tpu_custom_call.1} parent=1 // pred_fallthru
      _
    %145 = vsyncpa [#allocation3], 1
    %146 = vsyncpa [#allocation6], 1
    %147 = vsyncpa [#allocation4], 1

</llo_original>
